<compile_context>
chip_gen: v6e
topology: v6e:2x2x1
jax: 0.10.0
libtpu: 0.0.40
codegen_flags: <defaults>
</compile_context>

<pallas_src>
import functools

import numpy as np
import jax
import jax.numpy as jnp
from jax import lax
from jax.experimental import pallas as pl
from jax.experimental.pallas import tpu as pltpu

# Abramowitz & Stegun 4.4.46 minimax coefficients for arccos (|err| ~ 2e-8 rad).
_ACOS_COEFFS = (-0.0012624911, 0.0066700901, -0.0170881256, 0.0308918810,
                -0.0501743046, 0.0889789874, -0.2145988016, 1.5707963050)


def _acos_scaled(x, scale):
    # scale * arccos(x) via mul/add/sqrt/select only (guaranteed Mosaic lowering).
    # `scale` is folded into the coefficients, so the scaling is free.
    ax = jnp.abs(x)
    p = jnp.float32(_ACOS_COEFFS[0] * scale)
    for c in _ACOS_COEFFS[1:]:
        p = p * ax + jnp.float32(c * scale)
    r = p * jnp.sqrt(jnp.float32(1.0) - ax)
    return jnp.where(x < 0, jnp.float32(np.pi * scale) - r, r)


def hsi_kernel(img_ref, acc_ref, *, img_h, tile_h, tiles_per_core):
    # img_ref : (3, tile_h, W) uint8 block (R, G, B), raw 0..255.
    # acc_ref : (1, 3, 8, W) f32 output block, resident across the row-tile axis.
    #           acc_ref[0, c] accumulates masked column sums of {H/360, S, R+G+B}.
    p = pl.program_id(0)
    t = pl.program_id(1)

    @pl.when(t == 0)
    def _init():
        acc_ref[...] = jnp.zeros_like(acc_ref)

    # ToTensor()'s /255 is folded out of the math; r/g/b are exact ints in [0, 255].
    r = img_ref[0].astype(jnp.float32)
    g = img_ref[1].astype(jnp.float32)
    b = img_ref[2].astype(jnp.float32)

    # --- S = 1 - 3*min / clamp(sum, 1e-6)   (raw domain -> clamp at 255*1e-6) ----
    ch_sum = r + g + b                                   # reused for I
    min3 = 3.0 * jnp.minimum(jnp.minimum(r, g), b)
    denom = jnp.maximum(ch_sum, jnp.float32(255.0e-6))
    inv = pl.reciprocal(denom, approx=True)              # EUP
    inv = inv * (2.0 - denom * inv)                      # one Newton step -> ~f32 exact
    s_val = 1.0 - min3 * inv

    # --- H / 360 ------------------------------------------------------------------
    num = (2.0 * r - g - b) * 0.5
    d2 = (r - g) ** 2 + (r - b) * (g - b)                # >= 0
    # num / max(sqrt(d2), 255e-6) == num * rsqrt(max(d2, (255e-6)^2))   (sqrt monotone)
    ratio = jnp.clip(
        num * lax.rsqrt(jnp.maximum(d2, jnp.float32((255.0e-6) ** 2))),
        -1.0 + 1e-6, 1.0 - 1e-6)
    theta_n = _acos_scaled(ratio, 1.0 / 360.0)           # acos(ratio)/360  (<= ~0.009)
    # ceil((g-b)*(1/255)): 255 * fl32(1/255) rounds to exactly 1.0 (1/2^31 below the
    # rounding boundary), so this matches torch's ceil(g/255 - b/255) for every uint8
    # pair, including the g-b == +/-255 corner the spec's ceil deliberately keeps.
    logistic = jnp.ceil((g - b) * (1.0 / 255.0))
    h_val = theta_n * logistic + (1.0 - logistic) * (1.0 - theta_n)

    # --- masked row reduction on the (otherwise idle) MXU --------------------------
    # The ones-LHS doubles as the row-validity mask: rows past img_h (partial last
    # tile, or a fully out-of-range overhang tile of the 2-core split) contribute 0,
    # so no per-pixel masking is ever needed and full tiles pay nothing.
    v_block = p * tiles_per_core + t                     # unclamped virtual tile index
    rows = v_block * tile_h + lax.broadcasted_iota(jnp.int32, (8, tile_h), 1)
    ones_lhs = (rows < img_h).astype(jnp.float32)        # (8, tile_h), rows identical
    acc_ref[0, 0] += jnp.dot(ones_lhs, h_val, preferred_element_type=jnp.float32)
    acc_ref[0, 1] += jnp.dot(ones_lhs, s_val, preferred_element_type=jnp.float32)
    acc_ref[0, 2] += jnp.dot(ones_lhs, ch_sum, preferred_element_type=jnp.float32)


def hsi_calculator(image, *, data_format="HWC", max_tile_h=256):
    if data_format == "HWC":
        # ToTensor channel reorder only; stays uint8 (1 byte/px/ch into the kernel).
        img = jnp.transpose(image, (2, 0, 1))            # (3, H, W) uint8
    elif data_format == "CHW":
        img = image                                      # skip the XLA transpose pass
    else:
        raise ValueError("data_format must be 'HWC' or 'CHW'")
    c, img_h, img_w = img.shape
    assert c == 3

    # Tile height: multiple of 32 (uint8 sublane packing) and sized so the live f32
    # intermediates (~56 B per tile pixel incl. double-buffered uint8 input) fit
    # comfortably inside the scoped VMEM of every generation (v7x worst case).
    rows_by_vmem = max(32, (20 << 20) // (56 * img_w))
    cap = max(32, (min(int(max_tile_h), rows_by_vmem) // 32) * 32)
    tile_h = img_h if img_h <= cap else cap

    n_tiles = pl.cdiv(img_h, tile_h)
    num_cores = 2 if n_tiles > 1 else 1                  # v7x: 2 TCs; serial elsewhere
    tiles_per_core = pl.cdiv(n_tiles, num_cores)

    def img_index_map(p, t):
        v = p * tiles_per_core + t
        # Clamp so the DMA stays in-bounds; overhang tiles are zeroed by the ones-LHS.
        return 0, jnp.minimum(v, n_tiles - 1), 0

    def acc_index_map(p, t):
        return p, 0, 0, 0                                # per-core resident accumulator

    kernel = functools.partial(hsi_kernel, img_h=img_h, tile_h=tile_h,
                               tiles_per_core=tiles_per_core)

    n_px = img_h * img_w
    cost = pl.CostEstimate(
        flops=90 * n_px,
        transcendentals=3 * n_px,
        bytes_accessed=3 * n_px + num_cores * 3 * 8 * img_w * 4,
    )

    partial_sums = pl.pallas_call(
        kernel,
        out_shape=jax.ShapeDtypeStruct((num_cores, 3, 8, img_w), jnp.float32),
        grid=(num_cores, tiles_per_core),
        in_specs=[pl.BlockSpec((3, tile_h, img_w), img_index_map)],
        out_specs=pl.BlockSpec((1, 3, 8, img_w), acc_index_map),
        compiler_params=pltpu.CompilerParams(
            dimension_semantics=("parallel", "arbitrary"),
            vmem_limit_bytes=48 * 1024 * 1024,           # > v5e's 16 MiB default, < v7x cap
        ),
        cost_estimate=cost,
    )(img)

    # All 8 sublane rows of each accumulator are identical (all-equal ones-LHS rows);
    # take row 0 and do the tiny cross-core / cross-column reduce + normalize in XLA.
    sums = jnp.sum(partial_sums[:, :, 0, :], axis=(0, 2))
    inv_px = 1.0 / float(n_px)
    h = sums[0] * inv_px                                  # theta already /360 in-kernel
    s = sums[1] * inv_px
    i = sums[2] * (inv_px / (3.0 * 255.0))                # /255 and channel mean folded
    return h, s, i


def reference_numpy(image_hwc_u8):
    # Faithful NumPy translation of the PyTorch module (ToTensor + HSI math).
    img = np.transpose(np.asarray(image_hwc_u8, dtype=np.float32) / 255.0, (2, 0, 1))
    I = img.mean()
    Sum = img.sum(0)
    Min = 3.0 * img.min(0)
    S = (1.0 - Min / np.maximum(Sum, 1e-6)).mean()
    num = (2.0 * img[0] - img[1] - img[2]) / 2.0
    den = np.sqrt((img[0] - img[1]) ** 2 + (img[0] - img[2]) * (img[1] - img[2]))
    theta = np.arccos(np.clip(num / np.maximum(den, 1e-6), -1.0 + 1e-6, 1.0 - 1e-6))
    L = np.ceil(img[1] - img[2])
    H = (theta * L + (1.0 - L) * (360.0 - theta)).mean() / 360.0
    return H, S, I


if __name__ == "__main__":
    key = jax.random.PRNGKey(0)
    H, W = 80, 96
    # Small synthetic RGB image (HWC uint8), i.e. what ToTensor() would consume.
    image_hwc_u8 = jax.random.randint(
        key, (H, W, 3), 0, 256, dtype=jnp.int32).astype(jnp.uint8)

    # Path 1: default (single resident tile, trivial grid).
    h1, s1, i1 = jax.jit(hsi_calculator)(image_hwc_u8)
    # Path 2: force the tiled 2-way-parallel path with a masked partial last tile and
    # a fully-masked overhang tile (80 rows, 32-row tiles -> 3 tiles on a (2, 2) grid).
    h2, s2, i2 = jax.jit(functools.partial(hsi_calculator, max_tile_h=32))(image_hwc_u8)
    # Path 3: caller already provides CHW (skips the XLA HWC->CHW de-interleave pass).
    chw = jnp.transpose(image_hwc_u8, (2, 0, 1))
    h3, s3, i3 = jax.jit(functools.partial(hsi_calculator, data_format="CHW"))(chw)
    jax.block_until_ready((h1, s1, i1, h2, s2, i2, h3, s3, i3))

    hr, sr, ir = reference_numpy(np.asarray(image_hwc_u8))
    for (h, s, i) in ((h1, s1, i1), (h2, s2, i2), (h3, s3, i3)):
        assert abs(float(h) - hr) < 1e-4, (float(h), hr)
        assert abs(float(s) - sr) < 1e-4, (float(s), sr)
        assert abs(float(i) - ir) < 1e-4, (float(i), ir)

    print("KERNEL_OK")
</pallas_src>

<mosaic_0001>
module attributes {stable_mosaic.version = 11 : i64} {
  func.func @hsi_kernel(%arg0: i32, %arg1: i32, %arg2: memref<3x80x96xi8, #tpu.memory_space<vmem>>, %arg3: memref<1x3x8x96xf32, #tpu.memory_space<vmem>>) attributes {dimension_semantics = [#tpu.dimension_semantics<parallel>, #tpu.dimension_semantics<arbitrary>], iteration_bounds = array<i64: 1, 1>, scalar_prefetch = 0 : i64, scratch_operands = 0 : i64, tpu.core_type = #tpu.core_type<tc>, window_params = [{transform_indices = @transform_0, window_bounds = array<i64: 3, 80, 96>}, {transform_indices = @transform_1, window_bounds = array<i64: 1, 3, 8, 96>}]} {
    %c0_i32 = arith.constant 0 : i32
    %0 = arith.cmpi eq, %arg1, %c0_i32 : i32
    %1 = arith.extui %0 : i1 to i32
    %c0_i32_0 = arith.constant 0 : i32
    %2 = arith.cmpi ne, %1, %c0_i32_0 : i32
    scf.if %2 {
      %cst_57 = arith.constant 0.000000e+00 : f32
      %122 = vector.broadcast %cst_57 : f32 to vector<1x3x8x96xf32>
      %c0_58 = arith.constant 0 : index
      %c0_59 = arith.constant 0 : index
      %c0_60 = arith.constant 0 : index
      %c0_61 = arith.constant 0 : index
      %123 = vector.load %arg3[%c0_58, %c0_59, %c0_60, %c0_61] : memref<1x3x8x96xf32, #tpu.memory_space<vmem>>, vector<1x3x8x96xf32>
      tpu.vector_store %arg3[%c0_58, %c0_59, %c0_60, %c0_61], %122 {strides = array<i32>} : memref<1x3x8x96xf32, #tpu.memory_space<vmem>>, vector<1x3x8x96xf32>,
    } else {
    }
    %c0 = arith.constant 0 : index
    %c0_1 = arith.constant 0 : index
    %c0_2 = arith.constant 0 : index
    %3 = vector.load %arg2[%c0, %c0_1, %c0_2] : memref<3x80x96xi8, #tpu.memory_space<vmem>>, vector<1x80x96xi8>
    %4 = vector.shape_cast %3 : vector<1x80x96xi8> to vector<80x96xi8>
    %5 = arith.uitofp %4 : vector<80x96xi8> to vector<80x96xf32>
    %c1 = arith.constant 1 : index
    %c0_3 = arith.constant 0 : index
    %c0_4 = arith.constant 0 : index
    %6 = vector.load %arg2[%c1, %c0_3, %c0_4] : memref<3x80x96xi8, #tpu.memory_space<vmem>>, vector<1x80x96xi8>
    %7 = vector.shape_cast %6 : vector<1x80x96xi8> to vector<80x96xi8>
    %8 = arith.uitofp %7 : vector<80x96xi8> to vector<80x96xf32>
    %c2 = arith.constant 2 : index
    %c0_5 = arith.constant 0 : index
    %c0_6 = arith.constant 0 : index
    %9 = vector.load %arg2[%c2, %c0_5, %c0_6] : memref<3x80x96xi8, #tpu.memory_space<vmem>>, vector<1x80x96xi8>
    %10 = vector.shape_cast %9 : vector<1x80x96xi8> to vector<80x96xi8>
    %11 = arith.uitofp %10 : vector<80x96xi8> to vector<80x96xf32>
    %12 = arith.addf %5, %8 : vector<80x96xf32>
    %13 = arith.addf %12, %11 : vector<80x96xf32>
    %14 = arith.minimumf %5, %8 : vector<80x96xf32>
    %15 = arith.minimumf %14, %11 : vector<80x96xf32>
    %cst = arith.constant 3.000000e+00 : f32
    %16 = vector.broadcast %cst : f32 to vector<80x96xf32>
    %17 = arith.mulf %16, %15 : vector<80x96xf32>
    %cst_7 = arith.constant 2.550000e-04 : f32
    %18 = vector.broadcast %cst_7 : f32 to vector<80x96xf32>
    %19 = arith.maximumf %13, %18 : vector<80x96xf32>
    %20 = tpu.reciprocal %19 {approx = true} : vector<80x96xf32> -> vector<80x96xf32>
    %21 = arith.mulf %19, %20 : vector<80x96xf32>
    %cst_8 = arith.constant 2.000000e+00 : f32
    %22 = vector.broadcast %cst_8 : f32 to vector<80x96xf32>
    %23 = arith.subf %22, %21 : vector<80x96xf32>
    %24 = arith.mulf %20, %23 : vector<80x96xf32>
    %25 = arith.mulf %17, %24 : vector<80x96xf32>
    %cst_9 = arith.constant 1.000000e+00 : f32
    %26 = vector.broadcast %cst_9 : f32 to vector<80x96xf32>
    %27 = arith.subf %26, %25 : vector<80x96xf32>
    %cst_10 = arith.constant 2.000000e+00 : f32
    %28 = vector.broadcast %cst_10 : f32 to vector<80x96xf32>
    %29 = arith.mulf %28, %5 : vector<80x96xf32>
    %30 = arith.subf %29, %8 : vector<80x96xf32>
    %31 = arith.subf %30, %11 : vector<80x96xf32>
    %cst_11 = arith.constant 5.000000e-01 : f32
    %32 = vector.broadcast %cst_11 : f32 to vector<80x96xf32>
    %33 = arith.mulf %31, %32 : vector<80x96xf32>
    %34 = arith.subf %5, %8 : vector<80x96xf32>
    %35 = arith.mulf %34, %34 : vector<80x96xf32>
    %36 = arith.subf %5, %11 : vector<80x96xf32>
    %37 = arith.subf %8, %11 : vector<80x96xf32>
    %38 = arith.mulf %36, %37 : vector<80x96xf32>
    %39 = arith.addf %35, %38 : vector<80x96xf32>
    %cst_12 = arith.constant 6.50249987E-8 : f32
    %40 = vector.broadcast %cst_12 : f32 to vector<80x96xf32>
    %41 = arith.maximumf %39, %40 : vector<80x96xf32>
    %42 = math.rsqrt %41 : vector<80x96xf32>
    %43 = arith.mulf %33, %42 : vector<80x96xf32>
    %cst_13 = arith.constant -0.999998986 : f32
    %cst_14 = arith.constant 0.999998986 : f32
    %44 = vector.broadcast %cst_13 : f32 to vector<80x96xf32>
    %45 = arith.maximumf %44, %43 : vector<80x96xf32>
    %46 = vector.broadcast %cst_14 : f32 to vector<80x96xf32>
    %47 = arith.minimumf %46, %45 : vector<80x96xf32>
    %48 = math.absf %47 : vector<80x96xf32>
    %cst_15 = arith.constant -3.50691971E-6 : f32
    %49 = vector.broadcast %cst_15 : f32 to vector<80x96xf32>
    %50 = arith.mulf %49, %48 : vector<80x96xf32>
    %cst_16 = arith.constant 1.85280278E-5 : f32
    %51 = vector.broadcast %cst_16 : f32 to vector<80x96xf32>
    %52 = arith.addf %50, %51 : vector<80x96xf32>
    %53 = arith.mulf %52, %48 : vector<80x96xf32>
    %cst_17 = arith.constant -4.7467016E-5 : f32
    %54 = vector.broadcast %cst_17 : f32 to vector<80x96xf32>
    %55 = arith.addf %53, %54 : vector<80x96xf32>
    %56 = arith.mulf %55, %48 : vector<80x96xf32>
    %cst_18 = arith.constant 8.58107814E-5 : f32
    %57 = vector.broadcast %cst_18 : f32 to vector<80x96xf32>
    %58 = arith.addf %56, %57 : vector<80x96xf32>
    %59 = arith.mulf %58, %48 : vector<80x96xf32>
    %cst_19 = arith.constant -1.39373064E-4 : f32
    %60 = vector.broadcast %cst_19 : f32 to vector<80x96xf32>
    %61 = arith.addf %59, %60 : vector<80x96xf32>
    %62 = arith.mulf %61, %48 : vector<80x96xf32>
    %cst_20 = arith.constant 2.47163844E-4 : f32
    %63 = vector.broadcast %cst_20 : f32 to vector<80x96xf32>
    %64 = arith.addf %62, %63 : vector<80x96xf32>
    %65 = arith.mulf %64, %48 : vector<80x96xf32>
    %cst_21 = arith.constant -5.96107799E-4 : f32
    %66 = vector.broadcast %cst_21 : f32 to vector<80x96xf32>
    %67 = arith.addf %65, %66 : vector<80x96xf32>
    %68 = arith.mulf %67, %48 : vector<80x96xf32>
    %cst_22 = arith.constant 0.0043633231 : f32
    %69 = vector.broadcast %cst_22 : f32 to vector<80x96xf32>
    %70 = arith.addf %68, %69 : vector<80x96xf32>
    %cst_23 = arith.constant 1.000000e+00 : f32
    %71 = vector.broadcast %cst_23 : f32 to vector<80x96xf32>
    %72 = arith.subf %71, %48 : vector<80x96xf32>
    %73 = math.sqrt %72 : vector<80x96xf32>
    %74 = arith.mulf %70, %73 : vector<80x96xf32>
    %cst_24 = arith.constant 0.000000e+00 : f32
    %75 = vector.broadcast %cst_24 : f32 to vector<80x96xf32>
    %76 = arith.cmpf olt, %47, %75 : vector<80x96xf32>
    %cst_25 = arith.constant 0.00872664619 : f32
    %77 = vector.broadcast %cst_25 : f32 to vector<80x96xf32>
    %78 = arith.subf %77, %74 : vector<80x96xf32>
    %79 = arith.select %76, %78, %74 : vector<80x96xi1>, vector<80x96xf32>
    %80 = arith.subf %8, %11 : vector<80x96xf32>
    %cst_26 = arith.constant 0.00392156886 : f32
    %81 = vector.broadcast %cst_26 : f32 to vector<80x96xf32>
    %82 = arith.mulf %80, %81 : vector<80x96xf32>
    %83 = math.ceil %82 : vector<80x96xf32>
    %84 = arith.mulf %79, %83 : vector<80x96xf32>
    %cst_27 = arith.constant 1.000000e+00 : f32
    %85 = vector.broadcast %cst_27 : f32 to vector<80x96xf32>
    %86 = arith.subf %85, %83 : vector<80x96xf32>
    %cst_28 = arith.constant 1.000000e+00 : f32
    %87 = vector.broadcast %cst_28 : f32 to vector<80x96xf32>
    %88 = arith.subf %87, %79 : vector<80x96xf32>
    %89 = arith.mulf %86, %88 : vector<80x96xf32>
    %90 = arith.addf %84, %89 : vector<80x96xf32>
    %c1_i32 = arith.constant 1 : i32
    %91 = arith.muli %arg0, %c1_i32 : i32
    %92 = arith.addi %91, %arg1 : i32
    %c80_i32 = arith.constant 80 : i32
    %93 = arith.muli %92, %c80_i32 : i32
    %94 = tpu.iota {dimensions = array<i32: 1>} : vector<8x80xi32>
    %95 = vector.broadcast %93 : i32 to vector<8x80xi32>
    %96 = arith.addi %95, %94 : vector<8x80xi32>
    %c80_i32_29 = arith.constant 80 : i32
    %97 = vector.broadcast %c80_i32_29 : i32 to vector<8x80xi32>
    %98 = arith.cmpi slt, %96, %97 : vector<8x80xi32>
    %99 = arith.extui %98 : vector<8x80xi1> to vector<8x80xi32>
    %100 = arith.sitofp %99 : vector<8x80xi32> to vector<8x80xf32>
    %c0_30 = arith.constant 0 : index
    %c0_31 = arith.constant 0 : index
    %c0_32 = arith.constant 0 : index
    %c0_33 = arith.constant 0 : index
    %101 = vector.load %arg3[%c0_30, %c0_31, %c0_32, %c0_33] : memref<1x3x8x96xf32, #tpu.memory_space<vmem>>, vector<1x1x8x96xf32>
    %102 = vector.shape_cast %101 : vector<1x1x8x96xf32> to vector<8x96xf32>
    %cst_34 = arith.constant dense<0.000000e+00> : vector<8x96xf32>
    %103 = tpu.matmul %100, %90, %cst_34 {dimension_numbers = #tpu.dot_dimension_numbers<[1], [0], [0], [1], [0, 0, 1, 1], [], []>} : vector<8x80xf32>, vector<80x96xf32>, vector<8x96xf32> -> vector<8x96xf32>
    %104 = arith.addf %102, %103 : vector<8x96xf32>
    %c0_35 = arith.constant 0 : index
    %c0_36 = arith.constant 0 : index
    %c0_37 = arith.constant 0 : index
    %c0_38 = arith.constant 0 : index
    %105 = vector.load %arg3[%c0_35, %c0_36, %c0_37, %c0_38] : memref<1x3x8x96xf32, #tpu.memory_space<vmem>>, vector<1x1x8x96xf32>
    %106 = vector.shape_cast %105 : vector<1x1x8x96xf32> to vector<8x96xf32>
    %107 = vector.shape_cast %104 : vector<8x96xf32> to vector<1x1x8x96xf32>
    tpu.vector_store %arg3[%c0_35, %c0_36, %c0_37, %c0_38], %107 {strides = array<i32>} : memref<1x3x8x96xf32, #tpu.memory_space<vmem>>, vector<1x1x8x96xf32>,
    %c0_39 = arith.constant 0 : index
    %c1_40 = arith.constant 1 : index
    %c0_41 = arith.constant 0 : index
    %c0_42 = arith.constant 0 : index
    %108 = vector.load %arg3[%c0_39, %c1_40, %c0_41, %c0_42] : memref<1x3x8x96xf32, #tpu.memory_space<vmem>>, vector<1x1x8x96xf32>
    %109 = vector.shape_cast %108 : vector<1x1x8x96xf32> to vector<8x96xf32>
    %cst_43 = arith.constant dense<0.000000e+00> : vector<8x96xf32>
    %110 = tpu.matmul %100, %27, %cst_43 {dimension_numbers = #tpu.dot_dimension_numbers<[1], [0], [0], [1], [0, 0, 1, 1], [], []>} : vector<8x80xf32>, vector<80x96xf32>, vector<8x96xf32> -> vector<8x96xf32>
    %111 = arith.addf %109, %110 : vector<8x96xf32>
    %c0_44 = arith.constant 0 : index
    %c1_45 = arith.constant 1 : index
    %c0_46 = arith.constant 0 : index
    %c0_47 = arith.constant 0 : index
    %112 = vector.load %arg3[%c0_44, %c1_45, %c0_46, %c0_47] : memref<1x3x8x96xf32, #tpu.memory_space<vmem>>, vector<1x1x8x96xf32>
    %113 = vector.shape_cast %112 : vector<1x1x8x96xf32> to vector<8x96xf32>
    %114 = vector.shape_cast %111 : vector<8x96xf32> to vector<1x1x8x96xf32>
    tpu.vector_store %arg3[%c0_44, %c1_45, %c0_46, %c0_47], %114 {strides = array<i32>} : memref<1x3x8x96xf32, #tpu.memory_space<vmem>>, vector<1x1x8x96xf32>,
    %c0_48 = arith.constant 0 : index
    %c2_49 = arith.constant 2 : index
    %c0_50 = arith.constant 0 : index
    %c0_51 = arith.constant 0 : index
    %115 = vector.load %arg3[%c0_48, %c2_49, %c0_50, %c0_51] : memref<1x3x8x96xf32, #tpu.memory_space<vmem>>, vector<1x1x8x96xf32>
    %116 = vector.shape_cast %115 : vector<1x1x8x96xf32> to vector<8x96xf32>
    %cst_52 = arith.constant dense<0.000000e+00> : vector<8x96xf32>
    %117 = tpu.matmul %100, %13, %cst_52 {dimension_numbers = #tpu.dot_dimension_numbers<[1], [0], [0], [1], [0, 0, 1, 1], [], []>} : vector<8x80xf32>, vector<80x96xf32>, vector<8x96xf32> -> vector<8x96xf32>
    %118 = arith.addf %116, %117 : vector<8x96xf32>
    %c0_53 = arith.constant 0 : index
    %c2_54 = arith.constant 2 : index
    %c0_55 = arith.constant 0 : index
    %c0_56 = arith.constant 0 : index
    %119 = vector.load %arg3[%c0_53, %c2_54, %c0_55, %c0_56] : memref<1x3x8x96xf32, #tpu.memory_space<vmem>>, vector<1x1x8x96xf32>
    %120 = vector.shape_cast %119 : vector<1x1x8x96xf32> to vector<8x96xf32>
    %121 = vector.shape_cast %118 : vector<8x96xf32> to vector<1x1x8x96xf32>
    tpu.vector_store %arg3[%c0_53, %c2_54, %c0_55, %c0_56], %121 {strides = array<i32>} : memref<1x3x8x96xf32, #tpu.memory_space<vmem>>, vector<1x1x8x96xf32>,
    return
  }
  func.func @transform_0(%arg0: i32, %arg1: i32) -> (i32, i32, i32) {
    %c1_i32 = arith.constant 1 : i32
    %0 = arith.muli %arg0, %c1_i32 : i32
    %1 = arith.addi %0, %arg1 : i32
    %c0_i32 = arith.constant 0 : i32
    %2 = arith.minsi %1, %c0_i32 : i32
    %c0_i32_0 = arith.constant 0 : i32
    %c0_i32_1 = arith.constant 0 : i32
    %c0_i32_2 = arith.constant 0 : i32
    return %c0_i32_0, %2, %c0_i32_1 : i32, i32, i32
  }
  func.func @transform_1(%arg0: i32, %arg1: i32) -> (i32, i32, i32, i32) {
    %c0_i32 = arith.constant 0 : i32
    %c0_i32_0 = arith.constant 0 : i32
    %c0_i32_1 = arith.constant 0 : i32
    %c0_i32_2 = arith.constant 0 : i32
    return %arg0, %c0_i32, %c0_i32_0, %c0_i32_1 : i32, i32, i32, i32
  }
}

</mosaic_0001>

<llo_original>
// kernel: hsi_calculator.1
$region0: #{hsi_calculator.1}
  #allocation0 [shape = 'u32[]', space=smem, size = 0x4, offset = 0x4, fixed_abs, tag = 'smem constant byte address 0x4 - core index']
  #allocation1 [shape = 'u32[144,128]{1,0:T(1,128)}', space=vmem, size = 0x12000, scoped, tag = 'internal scratch']
  %s0 = inlined_call_operand.hbm [shape: u8[3,80,96], index: 0, kind: input, shape index: {}]
  %s1 = inlined_call_operand.vmem [shape: f32[1,3,8,96], index: 1, kind: output, shape index: {}]
  %s2 = sld [smem:[#allocation0]]
  $region22: #{hsi_calculator.1} parent=0
    _
  %s4 = ssub.s32 1, %s2
  %s5 = scalar_select 0, %s4, %s2
  $region1: #{hsi_calculator.1} parent=0
    #allocation2 [shape = 'u8[30720]{0}', space=vmem, size = 0x7800, scoped, tag = 'input window, operand 0, single buffered']
    #allocation3 [shape = 's32[1]{0}', space=sflag, size = 0x4, scoped, tag = 'scoped memory for hsi_calculator.1']
    %6 = vsyncpa [#allocation3], 0
    // Predicated region
    $region2: #{hsi_calculator.1} parent=1 // pred_check
      _
    $region3: #{hsi_calculator.1} parent=1 // pred_check_branch
      %8 = sbr.rel (0) target = $region5
    $region4: #{hsi_calculator.1} parent=1 // pred_region
      %s9 = sadd.s32 0, 0
      %p10 = scmp.lt.s32.totalorder %s9, 0
      %s11 = scalar_select %p10, %s9, 0
      %s12 = smul.u32 10, %s11
      %s14 = ssub.s32 960, 960
      %15 = vsyncadd [#allocation3], %s14
      %s16 = smul.addr %s12, 32
      %s17 = scalar_lea.hbm %s0, %s16
      %s18 = sshll.u32 [#allocation2], 4
      %s19 = int_to_ptr.vmem [resolvable:$true] %s18
      %24 = dma.hbm_to_vmem [thread:$0]  %s17, 960, %s19, [#allocation3], 32, 32, 2
    $region5: #{hsi_calculator.1} parent=1 // pred_fallthru
      _
    // Predicated region
    $region6: #{hsi_calculator.1} parent=1 // pred_check
      _
    $region7: #{hsi_calculator.1} parent=1 // pred_check_branch
      %26 = sbr.rel (0) target = $region9
    $region8: #{hsi_calculator.1} parent=1 // pred_region
      %27 = dma.done [#allocation3], 960
    $region9: #{hsi_calculator.1} parent=1 // pred_fallthru
      _
    %s28 = sadd.s32 0, 0
    %p29 = scmp.lt.s32.totalorder %s28, 0
    %s30 = scalar_select %p29, %s28, 0
    %s31 = smul.u32 10, %s30
    %p32 = scmp.eq.s32.totalorder 0, 0
    // Predicated region
    $region10: #{hsi_calculator.1} parent=1 // pred_check
      %p33 = pneg %p32
    $region11: #{hsi_calculator.1} parent=1 // pred_check_branch
      %35 = sbr.rel (%p33) target = $region13
    $region12: #{hsi_calculator.1} parent=1 // pred_region
      %vm36 = vcmask 785408
      %37 = vst.msk [vmem:[%s1] sm:$0xff] %vm36, 0.0
      %38 = vst.msk [vmem:[%s1 + $0x8] sm:$0xff] %vm36, 0.0
      %39 = vst.msk [vmem:[%s1 + $0x10] sm:$0xff] %vm36, 0.0
    $region13: #{hsi_calculator.1} parent=1 // pred_fallthru
      _
    %v40 = vld [vmem:[#allocation2] sm:$0x3]
    %v41 = vld [vmem:[#allocation2 + $0x2] sm:$0x3]
    %v42 = vld [vmem:[#allocation2 + $0x4] sm:$0x3]
    %v43 = vld [vmem:[#allocation2 + $0x6] sm:$0x3]
    %v44 = vld [vmem:[#allocation2 + $0x8] sm:$0x3]
    %v45 = vld [vmem:[#allocation2 + $0xa] sm:$0x3]
    %v46 = vld [vmem:[#allocation2 + $0xc] sm:$0x3]
    %v47 = vld [vmem:[#allocation2 + $0xe] sm:$0x3]
    %v48 = vld [vmem:[#allocation2 + $0x10] sm:$0x3]
    %v49 = vld [vmem:[#allocation2 + $0x12] sm:$0x3]
    %v50 = vunpack.c.0.s8 %v40
    %v51 = vunpack.c.0.s8 %v41
    %v52 = vunpack.c.0.s8 %v42
    %v53 = vunpack.c.0.s8 %v43
    %v54 = vunpack.c.0.s8 %v44
    %v55 = vunpack.c.0.s8 %v45
    %v56 = vunpack.c.0.s8 %v46
    %v57 = vunpack.c.0.s8 %v47
    %v58 = vunpack.c.0.s8 %v48
    %v59 = vunpack.c.0.s8 %v49
    %v60 = vand.u32 %v50, 255
    %v61 = vand.u32 %v51, 255
    %v62 = vand.u32 %v52, 255
    %v63 = vand.u32 %v53, 255
    %v64 = vand.u32 %v54, 255
    %v65 = vand.u32 %v55, 255
    %v66 = vand.u32 %v56, 255
    %v67 = vand.u32 %v57, 255
    %v68 = vand.u32 %v58, 255
    %v69 = vand.u32 %v59, 255
    %v70 = vcvt.s32.f32 %v60
    %v71 = vcvt.s32.f32 %v61
    %v72 = vcvt.s32.f32 %v62
    %v73 = vcvt.s32.f32 %v63
    %v74 = vcvt.s32.f32 %v64
    %v75 = vcvt.s32.f32 %v65
    %v76 = vcvt.s32.f32 %v66
    %v77 = vcvt.s32.f32 %v67
    %v78 = vcvt.s32.f32 %v68
    %v79 = vcvt.s32.f32 %v69
    %s80 = scalar_lea.vmem [#allocation2], 20
    %v81 = vld [vmem:[%s80] sm:$0x3]
    %v82 = vld [vmem:[%s80 + $0x2] sm:$0x3]
    %v83 = vld [vmem:[%s80 + $0x4] sm:$0x3]
    %v84 = vld [vmem:[%s80 + $0x6] sm:$0x3]
    %v85 = vld [vmem:[%s80 + $0x8] sm:$0x3]
    %v86 = vld [vmem:[%s80 + $0xa] sm:$0x3]
    %v87 = vld [vmem:[%s80 + $0xc] sm:$0x3]
    %v88 = vld [vmem:[%s80 + $0xe] sm:$0x3]
    %v89 = vld [vmem:[%s80 + $0x10] sm:$0x3]
    %v90 = vld [vmem:[%s80 + $0x12] sm:$0x3]
    %v91 = vunpack.c.0.s8 %v81
    %v92 = vunpack.c.0.s8 %v82
    %v93 = vunpack.c.0.s8 %v83
    %v94 = vunpack.c.0.s8 %v84
    %v95 = vunpack.c.0.s8 %v85
    %v96 = vunpack.c.0.s8 %v86
    %v97 = vunpack.c.0.s8 %v87
    %v98 = vunpack.c.0.s8 %v88
    %v99 = vunpack.c.0.s8 %v89
    %v100 = vunpack.c.0.s8 %v90
    %v101 = vand.u32 %v91, 255
    %v102 = vand.u32 %v92, 255
    %v103 = vand.u32 %v93, 255
    %v104 = vand.u32 %v94, 255
    %v105 = vand.u32 %v95, 255
    %v106 = vand.u32 %v96, 255
    %v107 = vand.u32 %v97, 255
    %v108 = vand.u32 %v98, 255
    %v109 = vand.u32 %v99, 255
    %v110 = vand.u32 %v100, 255
    %v111 = vcvt.s32.f32 %v101
    %v112 = vcvt.s32.f32 %v102
    %v113 = vcvt.s32.f32 %v103
    %v114 = vcvt.s32.f32 %v104
    %v115 = vcvt.s32.f32 %v105
    %v116 = vcvt.s32.f32 %v106
    %v117 = vcvt.s32.f32 %v107
    %v118 = vcvt.s32.f32 %v108
    %v119 = vcvt.s32.f32 %v109
    %v120 = vcvt.s32.f32 %v110
    %s121 = scalar_lea.vmem [#allocation2], 40
    %v122 = vld [vmem:[%s121] sm:$0x3]
    %v123 = vld [vmem:[%s121 + $0x2] sm:$0x3]
    %v124 = vld [vmem:[%s121 + $0x4] sm:$0x3]
    %v125 = vld [vmem:[%s121 + $0x6] sm:$0x3]
    %v126 = vld [vmem:[%s121 + $0x8] sm:$0x3]
    %v127 = vld [vmem:[%s121 + $0xa] sm:$0x3]
    %v128 = vld [vmem:[%s121 + $0xc] sm:$0x3]
    %v129 = vld [vmem:[%s121 + $0xe] sm:$0x3]
    %v130 = vld [vmem:[%s121 + $0x10] sm:$0x3]
    %v131 = vld [vmem:[%s121 + $0x12] sm:$0x3]
    %v132 = vunpack.c.0.s8 %v122
    %v133 = vunpack.c.0.s8 %v123
    %v134 = vunpack.c.0.s8 %v124
    %v135 = vunpack.c.0.s8 %v125
    %v136 = vunpack.c.0.s8 %v126
    %v137 = vunpack.c.0.s8 %v127
    %v138 = vunpack.c.0.s8 %v128
    %v139 = vunpack.c.0.s8 %v129
    %v140 = vunpack.c.0.s8 %v130
    %v141 = vunpack.c.0.s8 %v131
    %v142 = vand.u32 %v132, 255
    %v143 = vand.u32 %v133, 255
    %v144 = vand.u32 %v134, 255
    %v145 = vand.u32 %v135, 255
    %v146 = vand.u32 %v136, 255
    %v147 = vand.u32 %v137, 255
    %v148 = vand.u32 %v138, 255
    %v149 = vand.u32 %v139, 255
    %v150 = vand.u32 %v140, 255
    %v151 = vand.u32 %v141, 255
    %v152 = vcvt.s32.f32 %v142
    %v153 = vcvt.s32.f32 %v143
    %v154 = vcvt.s32.f32 %v144
    %v155 = vcvt.s32.f32 %v145
    %v156 = vcvt.s32.f32 %v146
    %v157 = vcvt.s32.f32 %v147
    %v158 = vcvt.s32.f32 %v148
    %v159 = vcvt.s32.f32 %v149
    %v160 = vcvt.s32.f32 %v150
    %v161 = vcvt.s32.f32 %v151
    %v162 = vadd.f32 %v70, %v111
    %v163 = vadd.f32 %v71, %v112
    %v164 = vadd.f32 %v72, %v113
    %v165 = vadd.f32 %v73, %v114
    %v166 = vadd.f32 %v74, %v115
    %v167 = vadd.f32 %v75, %v116
    %v168 = vadd.f32 %v76, %v117
    %v169 = vadd.f32 %v77, %v118
    %v170 = vadd.f32 %v78, %v119
    %v171 = vadd.f32 %v79, %v120
    %v172 = vadd.f32 %v162, %v152
    %v173 = vadd.f32 %v163, %v153
    %v174 = vadd.f32 %v164, %v154
    %v175 = vadd.f32 %v165, %v155
    %v176 = vadd.f32 %v166, %v156
    %v177 = vadd.f32 %v167, %v157
    %v178 = vadd.f32 %v168, %v158
    %v179 = vadd.f32 %v169, %v159
    %v180 = vadd.f32 %v170, %v160
    %v181 = vadd.f32 %v171, %v161
    %v182 = vmin.f32 %v70, %v111
    %v183 = vmin.f32 %v71, %v112
    %v184 = vmin.f32 %v72, %v113
    %v185 = vmin.f32 %v73, %v114
    %v186 = vmin.f32 %v74, %v115
    %v187 = vmin.f32 %v75, %v116
    %v188 = vmin.f32 %v76, %v117
    %v189 = vmin.f32 %v77, %v118
    %v190 = vmin.f32 %v78, %v119
    %v191 = vmin.f32 %v79, %v120
    %v192 = vmin.f32 %v182, %v152
    %v193 = vmin.f32 %v183, %v153
    %v194 = vmin.f32 %v184, %v154
    %v195 = vmin.f32 %v185, %v155
    %v196 = vmin.f32 %v186, %v156
    %v197 = vmin.f32 %v187, %v157
    %v198 = vmin.f32 %v188, %v158
    %v199 = vmin.f32 %v189, %v159
    %v200 = vmin.f32 %v190, %v160
    %v201 = vmin.f32 %v191, %v161
    %v202 = vmul.f32 %v192, 3.0
    %v203 = vmul.f32 %v193, 3.0
    %v204 = vmul.f32 %v194, 3.0
    %v205 = vmul.f32 %v195, 3.0
    %v206 = vmul.f32 %v196, 3.0
    %v207 = vmul.f32 %v197, 3.0
    %v208 = vmul.f32 %v198, 3.0
    %v209 = vmul.f32 %v199, 3.0
    %v210 = vmul.f32 %v200, 3.0
    %v211 = vmul.f32 %v201, 3.0
    %v212 = vmax.f32 %v172, 0.000255
    %v213 = vmax.f32 %v173, 0.000255
    %v214 = vmax.f32 %v174, 0.000255
    %v215 = vmax.f32 %v175, 0.000255
    %v216 = vmax.f32 %v176, 0.000255
    %v217 = vmax.f32 %v177, 0.000255
    %v218 = vmax.f32 %v178, 0.000255
    %v219 = vmax.f32 %v179, 0.000255
    %v220 = vmax.f32 %v180, 0.000255
    %v221 = vmax.f32 %v181, 0.000255
    %v222 = vrcp.pop %v212
    %v223 = vrcp.pop %v213
    %v224 = vrcp.pop %v214
    %v225 = vrcp.pop %v215
    %v226 = vrcp.pop %v216
    %v227 = vrcp.pop %v217
    %v228 = vrcp.pop %v218
    %v229 = vrcp.pop %v219
    %v230 = vrcp.pop %v220
    %v231 = vrcp.pop %v221
    %v232 = vmul.f32 %v212, %v222
    %v233 = vmul.f32 %v213, %v223
    %v234 = vmul.f32 %v214, %v224
    %v235 = vmul.f32 %v215, %v225
    %v236 = vmul.f32 %v216, %v226
    %v237 = vmul.f32 %v217, %v227
    %v238 = vmul.f32 %v218, %v228
    %v239 = vmul.f32 %v219, %v229
    %v240 = vmul.f32 %v220, %v230
    %v241 = vmul.f32 %v221, %v231
    %v242 = vsub.f32 2.0, %v232
    %v243 = vsub.f32 2.0, %v233
    %v244 = vsub.f32 2.0, %v234
    %v245 = vsub.f32 2.0, %v235
    %v246 = vsub.f32 2.0, %v236
    %v247 = vsub.f32 2.0, %v237
    %v248 = vsub.f32 2.0, %v238
    %v249 = vsub.f32 2.0, %v239
    %v250 = vsub.f32 2.0, %v240
    %v251 = vsub.f32 2.0, %v241
    %v252 = vmul.f32 %v222, %v242
    %v253 = vmul.f32 %v223, %v243
    %v254 = vmul.f32 %v224, %v244
    %v255 = vmul.f32 %v225, %v245
    %v256 = vmul.f32 %v226, %v246
    %v257 = vmul.f32 %v227, %v247
    %v258 = vmul.f32 %v228, %v248
    %v259 = vmul.f32 %v229, %v249
    %v260 = vmul.f32 %v230, %v250
    %v261 = vmul.f32 %v231, %v251
    %v262 = vmul.f32 %v202, %v252
    %v263 = vmul.f32 %v203, %v253
    %v264 = vmul.f32 %v204, %v254
    %v265 = vmul.f32 %v205, %v255
    %v266 = vmul.f32 %v206, %v256
    %v267 = vmul.f32 %v207, %v257
    %v268 = vmul.f32 %v208, %v258
    %v269 = vmul.f32 %v209, %v259
    %v270 = vmul.f32 %v210, %v260
    %v271 = vmul.f32 %v211, %v261
    %v272 = vsub.f32 1.0, %v262
    %v273 = vsub.f32 1.0, %v263
    %v274 = vsub.f32 1.0, %v264
    %v275 = vsub.f32 1.0, %v265
    %v276 = vsub.f32 1.0, %v266
    %v277 = vsub.f32 1.0, %v267
    %v278 = vsub.f32 1.0, %v268
    %v279 = vsub.f32 1.0, %v269
    %v280 = vsub.f32 1.0, %v270
    %v281 = vsub.f32 1.0, %v271
    %v282 = vmul.f32 %v70, 2.0
    %v283 = vmul.f32 %v71, 2.0
    %v284 = vmul.f32 %v72, 2.0
    %v285 = vmul.f32 %v73, 2.0
    %v286 = vmul.f32 %v74, 2.0
    %v287 = vmul.f32 %v75, 2.0
    %v288 = vmul.f32 %v76, 2.0
    %v289 = vmul.f32 %v77, 2.0
    %v290 = vmul.f32 %v78, 2.0
    %v291 = vmul.f32 %v79, 2.0
    %v292 = vsub.f32 %v282, %v111
    %v293 = vsub.f32 %v283, %v112
    %v294 = vsub.f32 %v284, %v113
    %v295 = vsub.f32 %v285, %v114
    %v296 = vsub.f32 %v286, %v115
    %v297 = vsub.f32 %v287, %v116
    %v298 = vsub.f32 %v288, %v117
    %v299 = vsub.f32 %v289, %v118
    %v300 = vsub.f32 %v290, %v119
    %v301 = vsub.f32 %v291, %v120
    %v302 = vsub.f32 %v292, %v152
    %v303 = vsub.f32 %v293, %v153
    %v304 = vsub.f32 %v294, %v154
    %v305 = vsub.f32 %v295, %v155
    %v306 = vsub.f32 %v296, %v156
    %v307 = vsub.f32 %v297, %v157
    %v308 = vsub.f32 %v298, %v158
    %v309 = vsub.f32 %v299, %v159
    %v310 = vsub.f32 %v300, %v160
    %v311 = vsub.f32 %v301, %v161
    %v312 = vmul.f32 %v302, 0.5
    %v313 = vmul.f32 %v303, 0.5
    %v314 = vmul.f32 %v304, 0.5
    %v315 = vmul.f32 %v305, 0.5
    %v316 = vmul.f32 %v306, 0.5
    %v317 = vmul.f32 %v307, 0.5
    %v318 = vmul.f32 %v308, 0.5
    %v319 = vmul.f32 %v309, 0.5
    %v320 = vmul.f32 %v310, 0.5
    %v321 = vmul.f32 %v311, 0.5
    %v322 = vsub.f32 %v70, %v111
    %v323 = vsub.f32 %v71, %v112
    %v324 = vsub.f32 %v72, %v113
    %v325 = vsub.f32 %v73, %v114
    %v326 = vsub.f32 %v74, %v115
    %v327 = vsub.f32 %v75, %v116
    %v328 = vsub.f32 %v76, %v117
    %v329 = vsub.f32 %v77, %v118
    %v330 = vsub.f32 %v78, %v119
    %v331 = vsub.f32 %v79, %v120
    %v332 = vmul.f32 %v322, %v322
    %v333 = vmul.f32 %v323, %v323
    %v334 = vmul.f32 %v324, %v324
    %v335 = vmul.f32 %v325, %v325
    %v336 = vmul.f32 %v326, %v326
    %v337 = vmul.f32 %v327, %v327
    %v338 = vmul.f32 %v328, %v328
    %v339 = vmul.f32 %v329, %v329
    %v340 = vmul.f32 %v330, %v330
    %v341 = vmul.f32 %v331, %v331
    %v342 = vsub.f32 %v70, %v152
    %v343 = vsub.f32 %v71, %v153
    %v344 = vsub.f32 %v72, %v154
    %v345 = vsub.f32 %v73, %v155
    %v346 = vsub.f32 %v74, %v156
    %v347 = vsub.f32 %v75, %v157
    %v348 = vsub.f32 %v76, %v158
    %v349 = vsub.f32 %v77, %v159
    %v350 = vsub.f32 %v78, %v160
    %v351 = vsub.f32 %v79, %v161
    %v352 = vsub.f32 %v111, %v152
    %v353 = vsub.f32 %v112, %v153
    %v354 = vsub.f32 %v113, %v154
    %v355 = vsub.f32 %v114, %v155
    %v356 = vsub.f32 %v115, %v156
    %v357 = vsub.f32 %v116, %v157
    %v358 = vsub.f32 %v117, %v158
    %v359 = vsub.f32 %v118, %v159
    %v360 = vsub.f32 %v119, %v160
    %v361 = vsub.f32 %v120, %v161
    %v362 = vmul.f32 %v342, %v352
    %v363 = vmul.f32 %v343, %v353
    %v364 = vmul.f32 %v344, %v354
    %v365 = vmul.f32 %v345, %v355
    %v366 = vmul.f32 %v346, %v356
    %v367 = vmul.f32 %v347, %v357
    %v368 = vmul.f32 %v348, %v358
    %v369 = vmul.f32 %v349, %v359
    %v370 = vmul.f32 %v350, %v360
    %v371 = vmul.f32 %v351, %v361
    %v372 = vadd.f32 %v332, %v362
    %v373 = vadd.f32 %v333, %v363
    %v374 = vadd.f32 %v334, %v364
    %v375 = vadd.f32 %v335, %v365
    %v376 = vadd.f32 %v336, %v366
    %v377 = vadd.f32 %v337, %v367
    %v378 = vadd.f32 %v338, %v368
    %v379 = vadd.f32 %v339, %v369
    %v380 = vadd.f32 %v340, %v370
    %v381 = vadd.f32 %v341, %v371
    %v382 = vmax.f32 %v372, 6.5025e-08
    %v383 = vmax.f32 %v373, 6.5025e-08
    %v384 = vmax.f32 %v374, 6.5025e-08
    %v385 = vmax.f32 %v375, 6.5025e-08
    %v386 = vmax.f32 %v376, 6.5025e-08
    %v387 = vmax.f32 %v377, 6.5025e-08
    %v388 = vmax.f32 %v378, 6.5025e-08
    %v389 = vmax.f32 %v379, 6.5025e-08
    %v390 = vmax.f32 %v380, 6.5025e-08
    %v391 = vmax.f32 %v381, 6.5025e-08
    %v392 = vrsqrt.pop %v382
    %v393 = vrsqrt.pop %v383
    %v394 = vrsqrt.pop %v384
    %v395 = vrsqrt.pop %v385
    %v396 = vrsqrt.pop %v386
    %v397 = vrsqrt.pop %v387
    %v398 = vrsqrt.pop %v388
    %v399 = vrsqrt.pop %v389
    %v400 = vrsqrt.pop %v390
    %v401 = vrsqrt.pop %v391
    %v402 = vmul.f32 %v312, %v392
    %v403 = vmul.f32 %v313, %v393
    %v404 = vmul.f32 %v314, %v394
    %v405 = vmul.f32 %v315, %v395
    %v406 = vmul.f32 %v316, %v396
    %v407 = vmul.f32 %v317, %v397
    %v408 = vmul.f32 %v318, %v398
    %v409 = vmul.f32 %v319, %v399
    %v410 = vmul.f32 %v320, %v400
    %v411 = vmul.f32 %v321, %v401
    %v412 = vmax.f32 %v402, -0.999999
    %v413 = vmax.f32 %v403, -0.999999
    %v414 = vmax.f32 %v404, -0.999999
    %v415 = vmax.f32 %v405, -0.999999
    %v416 = vmax.f32 %v406, -0.999999
    %v417 = vmax.f32 %v407, -0.999999
    %v418 = vmax.f32 %v408, -0.999999
    %v419 = vmax.f32 %v409, -0.999999
    %v420 = vmax.f32 %v410, -0.999999
    %v421 = vmax.f32 %v411, -0.999999
    %v422 = vmin.f32 %v412, 0.999999
    %v423 = vmin.f32 %v413, 0.999999
    %v424 = vmin.f32 %v414, 0.999999
    %v425 = vmin.f32 %v415, 0.999999
    %v426 = vmin.f32 %v416, 0.999999
    %v427 = vmin.f32 %v417, 0.999999
    %v428 = vmin.f32 %v418, 0.999999
    %v429 = vmin.f32 %v419, 0.999999
    %v430 = vmin.f32 %v420, 0.999999
    %v431 = vmin.f32 %v421, 0.999999
    %v432 = vand.u32 2147483647, %v422
    %v433 = vand.u32 2147483647, %v423
    %v434 = vand.u32 2147483647, %v424
    %v435 = vand.u32 2147483647, %v425
    %v436 = vand.u32 2147483647, %v426
    %v437 = vand.u32 2147483647, %v427
    %v438 = vand.u32 2147483647, %v428
    %v439 = vand.u32 2147483647, %v429
    %v440 = vand.u32 2147483647, %v430
    %v441 = vand.u32 2147483647, %v431
    %v442 = vmul.f32 %v432, -3.5069197e-06
    %v443 = vmul.f32 %v433, -3.5069197e-06
    %v444 = vmul.f32 %v434, -3.5069197e-06
    %v445 = vmul.f32 %v435, -3.5069197e-06
    %v446 = vmul.f32 %v436, -3.5069197e-06
    %v447 = vmul.f32 %v437, -3.5069197e-06
    %v448 = vmul.f32 %v438, -3.5069197e-06
    %v449 = vmul.f32 %v439, -3.5069197e-06
    %v450 = vmul.f32 %v440, -3.5069197e-06
    %v451 = vmul.f32 %v441, -3.5069197e-06
    %v452 = vadd.f32 %v442, 1.8528028e-05
    %v453 = vadd.f32 %v443, 1.8528028e-05
    %v454 = vadd.f32 %v444, 1.8528028e-05
    %v455 = vadd.f32 %v445, 1.8528028e-05
    %v456 = vadd.f32 %v446, 1.8528028e-05
    %v457 = vadd.f32 %v447, 1.8528028e-05
    %v458 = vadd.f32 %v448, 1.8528028e-05
    %v459 = vadd.f32 %v449, 1.8528028e-05
    %v460 = vadd.f32 %v450, 1.8528028e-05
    %v461 = vadd.f32 %v451, 1.8528028e-05
    %v462 = vmul.f32 %v452, %v432
    %v463 = vmul.f32 %v453, %v433
    %v464 = vmul.f32 %v454, %v434
    %v465 = vmul.f32 %v455, %v435
    %v466 = vmul.f32 %v456, %v436
    %v467 = vmul.f32 %v457, %v437
    %v468 = vmul.f32 %v458, %v438
    %v469 = vmul.f32 %v459, %v439
    %v470 = vmul.f32 %v460, %v440
    %v471 = vmul.f32 %v461, %v441
    %v472 = vadd.f32 %v462, -4.7467016e-05
    %v473 = vadd.f32 %v463, -4.7467016e-05
    %v474 = vadd.f32 %v464, -4.7467016e-05
    %v475 = vadd.f32 %v465, -4.7467016e-05
    %v476 = vadd.f32 %v466, -4.7467016e-05
    %v477 = vadd.f32 %v467, -4.7467016e-05
    %v478 = vadd.f32 %v468, -4.7467016e-05
    %v479 = vadd.f32 %v469, -4.7467016e-05
    %v480 = vadd.f32 %v470, -4.7467016e-05
    %v481 = vadd.f32 %v471, -4.7467016e-05
    %v482 = vmul.f32 %v472, %v432
    %v483 = vmul.f32 %v473, %v433
    %v484 = vmul.f32 %v474, %v434
    %v485 = vmul.f32 %v475, %v435
    %v486 = vmul.f32 %v476, %v436
    %v487 = vmul.f32 %v477, %v437
    %v488 = vmul.f32 %v478, %v438
    %v489 = vmul.f32 %v479, %v439
    %v490 = vmul.f32 %v480, %v440
    %v491 = vmul.f32 %v481, %v441
    %v492 = vadd.f32 %v482, 8.581078e-05
    %v493 = vadd.f32 %v483, 8.581078e-05
    %v494 = vadd.f32 %v484, 8.581078e-05
    %v495 = vadd.f32 %v485, 8.581078e-05
    %v496 = vadd.f32 %v486, 8.581078e-05
    %v497 = vadd.f32 %v487, 8.581078e-05
    %v498 = vadd.f32 %v488, 8.581078e-05
    %v499 = vadd.f32 %v489, 8.581078e-05
    %v500 = vadd.f32 %v490, 8.581078e-05
    %v501 = vadd.f32 %v491, 8.581078e-05
    %v502 = vmul.f32 %v492, %v432
    %v503 = vmul.f32 %v493, %v433
    %v504 = vmul.f32 %v494, %v434
    %v505 = vmul.f32 %v495, %v435
    %v506 = vmul.f32 %v496, %v436
    %v507 = vmul.f32 %v497, %v437
    %v508 = vmul.f32 %v498, %v438
    %v509 = vmul.f32 %v499, %v439
    %v510 = vmul.f32 %v500, %v440
    %v511 = vmul.f32 %v501, %v441
    %v512 = vadd.f32 %v502, -0.00013937306
    %v513 = vadd.f32 %v503, -0.00013937306
    %v514 = vadd.f32 %v504, -0.00013937306
    %v515 = vadd.f32 %v505, -0.00013937306
    %v516 = vadd.f32 %v506, -0.00013937306
    %v517 = vadd.f32 %v507, -0.00013937306
    %v518 = vadd.f32 %v508, -0.00013937306
    %v519 = vadd.f32 %v509, -0.00013937306
    %v520 = vadd.f32 %v510, -0.00013937306
    %v521 = vadd.f32 %v511, -0.00013937306
    %v522 = vmul.f32 %v512, %v432
    %v523 = vmul.f32 %v513, %v433
    %v524 = vmul.f32 %v514, %v434
    %v525 = vmul.f32 %v515, %v435
    %v526 = vmul.f32 %v516, %v436
    %v527 = vmul.f32 %v517, %v437
    %v528 = vmul.f32 %v518, %v438
    %v529 = vmul.f32 %v519, %v439
    %v530 = vmul.f32 %v520, %v440
    %v531 = vmul.f32 %v521, %v441
    %v532 = vadd.f32 %v522, 0.00024716384
    %v533 = vadd.f32 %v523, 0.00024716384
    %v534 = vadd.f32 %v524, 0.00024716384
    %v535 = vadd.f32 %v525, 0.00024716384
    %v536 = vadd.f32 %v526, 0.00024716384
    %v537 = vadd.f32 %v527, 0.00024716384
    %v538 = vadd.f32 %v528, 0.00024716384
    %v539 = vadd.f32 %v529, 0.00024716384
    %v540 = vadd.f32 %v530, 0.00024716384
    %v541 = vadd.f32 %v531, 0.00024716384
    %v542 = vmul.f32 %v532, %v432
    %v543 = vmul.f32 %v533, %v433
    %v544 = vmul.f32 %v534, %v434
    %v545 = vmul.f32 %v535, %v435
    %v546 = vmul.f32 %v536, %v436
    %v547 = vmul.f32 %v537, %v437
    %v548 = vmul.f32 %v538, %v438
    %v549 = vmul.f32 %v539, %v439
    %v550 = vmul.f32 %v540, %v440
    %v551 = vmul.f32 %v541, %v441
    %v552 = vadd.f32 %v542, -0.0005961078
    %v553 = vadd.f32 %v543, -0.0005961078
    %v554 = vadd.f32 %v544, -0.0005961078
    %v555 = vadd.f32 %v545, -0.0005961078
    %v556 = vadd.f32 %v546, -0.0005961078
    %v557 = vadd.f32 %v547, -0.0005961078
    %v558 = vadd.f32 %v548, -0.0005961078
    %v559 = vadd.f32 %v549, -0.0005961078
    %v560 = vadd.f32 %v550, -0.0005961078
    %v561 = vadd.f32 %v551, -0.0005961078
    %v562 = vmul.f32 %v552, %v432
    %v563 = vmul.f32 %v553, %v433
    %v564 = vmul.f32 %v554, %v434
    %v565 = vmul.f32 %v555, %v435
    %v566 = vmul.f32 %v556, %v436
    %v567 = vmul.f32 %v557, %v437
    %v568 = vmul.f32 %v558, %v438
    %v569 = vmul.f32 %v559, %v439
    %v570 = vmul.f32 %v560, %v440
    %v571 = vmul.f32 %v561, %v441
    %v572 = vadd.f32 %v562, 0.004363323
    %v573 = vadd.f32 %v563, 0.004363323
    %v574 = vadd.f32 %v564, 0.004363323
    %v575 = vadd.f32 %v565, 0.004363323
    %v576 = vadd.f32 %v566, 0.004363323
    %v577 = vadd.f32 %v567, 0.004363323
    %v578 = vadd.f32 %v568, 0.004363323
    %v579 = vadd.f32 %v569, 0.004363323
    %v580 = vadd.f32 %v570, 0.004363323
    %v581 = vadd.f32 %v571, 0.004363323
    %v582 = vsub.f32 1.0, %v432
    %v583 = vsub.f32 1.0, %v433
    %v584 = vsub.f32 1.0, %v434
    %v585 = vsub.f32 1.0, %v435
    %v586 = vsub.f32 1.0, %v436
    %v587 = vsub.f32 1.0, %v437
    %v588 = vsub.f32 1.0, %v438
    %v589 = vsub.f32 1.0, %v439
    %v590 = vsub.f32 1.0, %v440
    %v591 = vsub.f32 1.0, %v441
    %v592 = vrsqrt.pop %v582
    %v593 = vmul.f32 %v582, %v592
    %vm594 = vcmp.eq.f32.partialorder %v582, inf
    %v595 = vsel %vm594, %v582, %v593
    %vm596 = vcmp.eq.f32.partialorder %v582, 0.0
    %v597 = vand.u32 %v582, 2147483648
    %v598 = vsel %vm596, %v597, %v595
    %v599 = vrsqrt.pop %v583
    %v600 = vmul.f32 %v583, %v599
    %vm601 = vcmp.eq.f32.partialorder %v583, inf
    %v602 = vsel %vm601, %v583, %v600
    %vm603 = vcmp.eq.f32.partialorder %v583, 0.0
    %v604 = vand.u32 %v583, 2147483648
    %v605 = vsel %vm603, %v604, %v602
    %v606 = vrsqrt.pop %v584
    %v607 = vmul.f32 %v584, %v606
    %vm608 = vcmp.eq.f32.partialorder %v584, inf
    %v609 = vsel %vm608, %v584, %v607
    %vm610 = vcmp.eq.f32.partialorder %v584, 0.0
    %v611 = vand.u32 %v584, 2147483648
    %v612 = vsel %vm610, %v611, %v609
    %v613 = vrsqrt.pop %v585
    %v614 = vmul.f32 %v585, %v613
    %vm615 = vcmp.eq.f32.partialorder %v585, inf
    %v616 = vsel %vm615, %v585, %v614
    %vm617 = vcmp.eq.f32.partialorder %v585, 0.0
    %v618 = vand.u32 %v585, 2147483648
    %v619 = vsel %vm617, %v618, %v616
    %v620 = vrsqrt.pop %v586
    %v621 = vmul.f32 %v586, %v620
    %vm622 = vcmp.eq.f32.partialorder %v586, inf
    %v623 = vsel %vm622, %v586, %v621
    %vm624 = vcmp.eq.f32.partialorder %v586, 0.0
    %v625 = vand.u32 %v586, 2147483648
    %v626 = vsel %vm624, %v625, %v623
    %v627 = vrsqrt.pop %v587
    %v628 = vmul.f32 %v587, %v627
    %vm629 = vcmp.eq.f32.partialorder %v587, inf
    %v630 = vsel %vm629, %v587, %v628
    %vm631 = vcmp.eq.f32.partialorder %v587, 0.0
    %v632 = vand.u32 %v587, 2147483648
    %v633 = vsel %vm631, %v632, %v630
    %v634 = vrsqrt.pop %v588
    %v635 = vmul.f32 %v588, %v634
    %vm636 = vcmp.eq.f32.partialorder %v588, inf
    %v637 = vsel %vm636, %v588, %v635
    %vm638 = vcmp.eq.f32.partialorder %v588, 0.0
    %v639 = vand.u32 %v588, 2147483648
    %v640 = vsel %vm638, %v639, %v637
    %v641 = vrsqrt.pop %v589
    %v642 = vmul.f32 %v589, %v641
    %vm643 = vcmp.eq.f32.partialorder %v589, inf
    %v644 = vsel %vm643, %v589, %v642
    %vm645 = vcmp.eq.f32.partialorder %v589, 0.0
    %v646 = vand.u32 %v589, 2147483648
    %v647 = vsel %vm645, %v646, %v644
    %v648 = vrsqrt.pop %v590
    %v649 = vmul.f32 %v590, %v648
    %vm650 = vcmp.eq.f32.partialorder %v590, inf
    %v651 = vsel %vm650, %v590, %v649
    %vm652 = vcmp.eq.f32.partialorder %v590, 0.0
    %v653 = vand.u32 %v590, 2147483648
    %v654 = vsel %vm652, %v653, %v651
    %v655 = vrsqrt.pop %v591
    %v656 = vmul.f32 %v591, %v655
    %vm657 = vcmp.eq.f32.partialorder %v591, inf
    %v658 = vsel %vm657, %v591, %v656
    %vm659 = vcmp.eq.f32.partialorder %v591, 0.0
    %v660 = vand.u32 %v591, 2147483648
    %v661 = vsel %vm659, %v660, %v658
    %v662 = vmul.f32 %v572, %v598
    %v663 = vmul.f32 %v573, %v605
    %v664 = vmul.f32 %v574, %v612
    %v665 = vmul.f32 %v575, %v619
    %v666 = vmul.f32 %v576, %v626
    %v667 = vmul.f32 %v577, %v633
    %v668 = vmul.f32 %v578, %v640
    %v669 = vmul.f32 %v579, %v647
    %v670 = vmul.f32 %v580, %v654
    %v671 = vmul.f32 %v581, %v661
    %vm672 = vcmp.lt.f32.partialorder %v422, 0.0
    %vm673 = vcmp.lt.f32.partialorder %v423, 0.0
    %vm674 = vcmp.lt.f32.partialorder %v424, 0.0
    %vm675 = vcmp.lt.f32.partialorder %v425, 0.0
    %vm676 = vcmp.lt.f32.partialorder %v426, 0.0
    %vm677 = vcmp.lt.f32.partialorder %v427, 0.0
    %vm678 = vcmp.lt.f32.partialorder %v428, 0.0
    %vm679 = vcmp.lt.f32.partialorder %v429, 0.0
    %vm680 = vcmp.lt.f32.partialorder %v430, 0.0
    %vm681 = vcmp.lt.f32.partialorder %v431, 0.0
    %v682 = vsub.f32 0.008726646, %v662
    %v683 = vsub.f32 0.008726646, %v663
    %v684 = vsub.f32 0.008726646, %v664
    %v685 = vsub.f32 0.008726646, %v665
    %v686 = vsub.f32 0.008726646, %v666
    %v687 = vsub.f32 0.008726646, %v667
    %v688 = vsub.f32 0.008726646, %v668
    %v689 = vsub.f32 0.008726646, %v669
    %v690 = vsub.f32 0.008726646, %v670
    %v691 = vsub.f32 0.008726646, %v671
    %v692 = vsel %vm672, %v682, %v662
    %v693 = vsel %vm673, %v683, %v663
    %v694 = vsel %vm674, %v684, %v664
    %v695 = vsel %vm675, %v685, %v665
    %v696 = vsel %vm676, %v686, %v666
    %v697 = vsel %vm677, %v687, %v667
    %v698 = vsel %vm678, %v688, %v668
    %v699 = vsel %vm679, %v689, %v669
    %v700 = vsel %vm680, %v690, %v670
    %v701 = vsel %vm681, %v691, %v671
    %v702 = vmul.f32 %v352, 0.003921569
    %v703 = vmul.f32 %v353, 0.003921569
    %v704 = vmul.f32 %v354, 0.003921569
    %v705 = vmul.f32 %v355, 0.003921569
    %v706 = vmul.f32 %v356, 0.003921569
    %v707 = vmul.f32 %v357, 0.003921569
    %v708 = vmul.f32 %v358, 0.003921569
    %v709 = vmul.f32 %v359, 0.003921569
    %v710 = vmul.f32 %v360, 0.003921569
    %v711 = vmul.f32 %v361, 0.003921569
    %v712 = vceil.f32 %v702
    %v713 = vceil.f32 %v703
    %v714 = vceil.f32 %v704
    %v715 = vceil.f32 %v705
    %v716 = vceil.f32 %v706
    %v717 = vceil.f32 %v707
    %v718 = vceil.f32 %v708
    %v719 = vceil.f32 %v709
    %v720 = vceil.f32 %v710
    %v721 = vceil.f32 %v711
    %v722 = vmul.f32 %v692, %v712
    %v723 = vmul.f32 %v693, %v713
    %v724 = vmul.f32 %v694, %v714
    %v725 = vmul.f32 %v695, %v715
    %v726 = vmul.f32 %v696, %v716
    %v727 = vmul.f32 %v697, %v717
    %v728 = vmul.f32 %v698, %v718
    %v729 = vmul.f32 %v699, %v719
    %v730 = vmul.f32 %v700, %v720
    %v731 = vmul.f32 %v701, %v721
    %v732 = vsub.f32 1.0, %v712
    %v733 = vsub.f32 1.0, %v713
    %v734 = vsub.f32 1.0, %v714
    %v735 = vsub.f32 1.0, %v715
    %v736 = vsub.f32 1.0, %v716
    %v737 = vsub.f32 1.0, %v717
    %v738 = vsub.f32 1.0, %v718
    %v739 = vsub.f32 1.0, %v719
    %v740 = vsub.f32 1.0, %v720
    %v741 = vsub.f32 1.0, %v721
    %v742 = vsub.f32 1.0, %v692
    %v743 = vsub.f32 1.0, %v693
    %v744 = vsub.f32 1.0, %v694
    %v745 = vsub.f32 1.0, %v695
    %v746 = vsub.f32 1.0, %v696
    %v747 = vsub.f32 1.0, %v697
    %v748 = vsub.f32 1.0, %v698
    %v749 = vsub.f32 1.0, %v699
    %v750 = vsub.f32 1.0, %v700
    %v751 = vsub.f32 1.0, %v701
    %v752 = vmul.f32 %v732, %v742
    %v753 = vmul.f32 %v733, %v743
    %v754 = vmul.f32 %v734, %v744
    %v755 = vmul.f32 %v735, %v745
    %v756 = vmul.f32 %v736, %v746
    %v757 = vmul.f32 %v737, %v747
    %v758 = vmul.f32 %v738, %v748
    %v759 = vmul.f32 %v739, %v749
    %v760 = vmul.f32 %v740, %v750
    %v761 = vmul.f32 %v741, %v751
    %v762 = vadd.f32 %v722, %v752
    %v763 = vadd.f32 %v723, %v753
    %v764 = vadd.f32 %v724, %v754
    %v765 = vadd.f32 %v725, %v755
    %v766 = vadd.f32 %v726, %v756
    %v767 = vadd.f32 %v727, %v757
    %v768 = vadd.f32 %v728, %v758
    %v769 = vadd.f32 %v729, %v759
    %v770 = vadd.f32 %v730, %v760
    %v771 = vadd.f32 %v731, %v761
    %s772 = sadd.s32 0, 0
    %s773 = smul.u32 %s772, 80
    %v774 = vlaneseq
    %v775 = vand.u32 %v774, 127
    %v776 = vstv %s773
    %v777 = vadd.s32 %v776, %v775
    %vm778 = vcmp.lt.s32.totalorder %v777, 80
    %v779 = vsel %vm778, 1, 0
    %v780 = vcvt.s32.f32 %v779
    %v781 = vld [vmem:[%s1] sm:$0xff]
    %vm782 = vcmask 654336
    %v784 = vsel %vm782, %v780, 0
    %786 = vmatprep.subr.mxu0 0.0
    %787 = vmatpush1.msra.mxu0 0.0
    %788 = vmatprep.subr.mxu0 0.0
    %789 = vmatpush1.msra.mxu0 0.0
    %790 = vmatprep.subr.mxu0 0.0
    %791 = vmatpush1.msra.mxu0 0.0
    %792 = vmatprep.subr.mxu0 0.0
    %793 = vmatpush1.msra.mxu0 0.0
    %794 = vmatprep.subr.mxu0 0.0
    %795 = vmatpush1.msra.mxu0 0.0
    %796 = vmatprep.subr.mxu0 0.0
    %797 = vmatpush1.msra.mxu0 0.0
    %798 = vmatprep.subr.mxu0 0.0
    %799 = vmatpush1.msra.mxu0 %v771
    %800 = vmatprep.subr.mxu0 0.0
    %801 = vmatpush1.msra.mxu0 %v770
    %802 = vmatprep.subr.mxu0 0.0
    %803 = vmatpush1.msra.mxu0 %v769
    %804 = vmatprep.subr.mxu0 0.0
    %805 = vmatpush1.msra.mxu0 %v768
    %806 = vmatprep.subr.mxu0 0.0
    %807 = vmatpush1.msra.mxu0 %v767
    %808 = vmatprep.subr.mxu0 0.0
    %809 = vmatpush1.msra.mxu0 %v766
    %810 = vmatprep.subr.mxu0 0.0
    %811 = vmatpush1.msra.mxu0 %v765
    %812 = vmatprep.subr.mxu0 0.0
    %813 = vmatpush1.msra.mxu0 %v764
    %814 = vmatprep.subr.mxu0 0.0
    %815 = vmatpush1.msra.mxu0 %v763
    %816 = vmatprep.subr.mxu0 0.0
    %817 = vmatpush1.msra.mxu0 %v762
    %818 = vmatprep.subr.mxu0 0.0
    %819 = vmatpush2.msra.mxu0 0.0
    %820 = vmatprep.subr.mxu0 0.0
    %821 = vmatpush2.msra.mxu0 0.0
    %822 = vmatprep.subr.mxu0 0.0
    %823 = vmatpush2.msra.mxu0 0.0
    %824 = vmatprep.subr.mxu0 0.0
    %825 = vmatpush2.msra.mxu0 0.0
    %826 = vmatprep.subr.mxu0 0.0
    %827 = vmatpush2.msra.mxu0 0.0
    %828 = vmatprep.subr.mxu0 0.0
    %829 = vmatpush2.msra.mxu0 0.0
    %830 = vmatprep.subr.mxu0 0.0
    %831 = vmatpush2.msra.mxu0 0.0
    %832 = vmatprep.subr.mxu0 0.0
    %833 = vmatpush2.msra.mxu0 0.0
    %834 = vmatprep.subr.mxu0 0.0
    %835 = vmatpush2.msra.mxu0 0.0
    %836 = vmatprep.subr.mxu0 0.0
    %837 = vmatpush2.msra.mxu0 0.0
    %838 = vmatprep.subr.mxu0 0.0
    %839 = vmatpush2.msra.mxu0 0.0
    %840 = vmatprep.subr.mxu0 0.0
    %841 = vmatpush2.msra.mxu0 0.0
    %842 = vmatprep.subr.mxu0 0.0
    %843 = vmatpush2.msra.mxu0 0.0
    %844 = vmatprep.subr.mxu0 0.0
    %845 = vmatpush2.msra.mxu0 0.0
    %846 = vmatprep.subr.mxu0 0.0
    %847 = vmatpush2.msra.mxu0 0.0
    %848 = vmatprep.subr.mxu0 0.0
    %849 = vmatpush2.msra.mxu0 0.0
    %850 = vmatprep.mubr.f32.mxu0 0.0
    %851 = vmatmul.mubr.f32.gmra.mxu0 %v784
    %v852 = vpop.f32.mrf.mxu0
    %v853 = vadd.f32 0.0, %v852
    %v854 = vpop.f32.mrf.mxu0
    %855 = vdwg.mxu0
    %v856 = vadd.f32 %v781, %v853
    %vm857 = vcmask 785408
    %858 = vst.msk [vmem:[%s1] sm:$0xff] %vm857, %v856
    %s859 = scalar_lea.vmem %s1, 8
    %v860 = vld [vmem:[%s859] sm:$0xff]
    %861 = vmatprep.subr.mxu0 0.0
    %862 = vmatpush1.msra.mxu0 0.0
    %863 = vmatprep.subr.mxu0 0.0
    %864 = vmatpush1.msra.mxu0 0.0
    %865 = vmatprep.subr.mxu0 0.0
    %866 = vmatpush1.msra.mxu0 0.0
    %867 = vmatprep.subr.mxu0 0.0
    %868 = vmatpush1.msra.mxu0 0.0
    %869 = vmatprep.subr.mxu0 0.0
    %870 = vmatpush1.msra.mxu0 0.0
    %871 = vmatprep.subr.mxu0 0.0
    %872 = vmatpush1.msra.mxu0 0.0
    %873 = vmatprep.subr.mxu0 0.0
    %874 = vmatpush1.msra.mxu0 %v281
    %875 = vmatprep.subr.mxu0 0.0
    %876 = vmatpush1.msra.mxu0 %v280
    %877 = vmatprep.subr.mxu0 0.0
    %878 = vmatpush1.msra.mxu0 %v279
    %879 = vmatprep.subr.mxu0 0.0
    %880 = vmatpush1.msra.mxu0 %v278
    %881 = vmatprep.subr.mxu0 0.0
    %882 = vmatpush1.msra.mxu0 %v277
    %883 = vmatprep.subr.mxu0 0.0
    %884 = vmatpush1.msra.mxu0 %v276
    %885 = vmatprep.subr.mxu0 0.0
    %886 = vmatpush1.msra.mxu0 %v275
    %887 = vmatprep.subr.mxu0 0.0
    %888 = vmatpush1.msra.mxu0 %v274
    %889 = vmatprep.subr.mxu0 0.0
    %890 = vmatpush1.msra.mxu0 %v273
    %891 = vmatprep.subr.mxu0 0.0
    %892 = vmatpush1.msra.mxu0 %v272
    %893 = vmatprep.subr.mxu0 0.0
    %894 = vmatpush2.msra.mxu0 0.0
    %895 = vmatprep.subr.mxu0 0.0
    %896 = vmatpush2.msra.mxu0 0.0
    %897 = vmatprep.subr.mxu0 0.0
    %898 = vmatpush2.msra.mxu0 0.0
    %899 = vmatprep.subr.mxu0 0.0
    %900 = vmatpush2.msra.mxu0 0.0
    %901 = vmatprep.subr.mxu0 0.0
    %902 = vmatpush2.msra.mxu0 0.0
    %903 = vmatprep.subr.mxu0 0.0
    %904 = vmatpush2.msra.mxu0 0.0
    %905 = vmatprep.subr.mxu0 0.0
    %906 = vmatpush2.msra.mxu0 0.0
    %907 = vmatprep.subr.mxu0 0.0
    %908 = vmatpush2.msra.mxu0 0.0
    %909 = vmatprep.subr.mxu0 0.0
    %910 = vmatpush2.msra.mxu0 0.0
    %911 = vmatprep.subr.mxu0 0.0
    %912 = vmatpush2.msra.mxu0 0.0
    %913 = vmatprep.subr.mxu0 0.0
    %914 = vmatpush2.msra.mxu0 0.0
    %915 = vmatprep.subr.mxu0 0.0
    %916 = vmatpush2.msra.mxu0 0.0
    %917 = vmatprep.subr.mxu0 0.0
    %918 = vmatpush2.msra.mxu0 0.0
    %919 = vmatprep.subr.mxu0 0.0
    %920 = vmatpush2.msra.mxu0 0.0
    %921 = vmatprep.subr.mxu0 0.0
    %922 = vmatpush2.msra.mxu0 0.0
    %923 = vmatprep.subr.mxu0 0.0
    %924 = vmatpush2.msra.mxu0 0.0
    %925 = vmatprep.mubr.f32.mxu0 0.0
    %926 = vmatmul.mubr.f32.gmra.mxu0 %v784
    %v927 = vpop.f32.mrf.mxu0
    %v928 = vadd.f32 0.0, %v927
    %v929 = vpop.f32.mrf.mxu0
    %930 = vdwg.mxu0
    %v931 = vadd.f32 %v860, %v928
    %932 = vst.msk [vmem:[%s859] sm:$0xff] %vm857, %v931
    %s933 = scalar_lea.vmem %s1, 16
    %v934 = vld [vmem:[%s933] sm:$0xff]
    %935 = vmatprep.subr.mxu0 0.0
    %936 = vmatpush1.msra.mxu0 0.0
    %937 = vmatprep.subr.mxu0 0.0
    %938 = vmatpush1.msra.mxu0 0.0
    %939 = vmatprep.subr.mxu0 0.0
    %940 = vmatpush1.msra.mxu0 0.0
    %941 = vmatprep.subr.mxu0 0.0
    %942 = vmatpush1.msra.mxu0 0.0
    %943 = vmatprep.subr.mxu0 0.0
    %944 = vmatpush1.msra.mxu0 0.0
    %945 = vmatprep.subr.mxu0 0.0
    %946 = vmatpush1.msra.mxu0 0.0
    %947 = vmatprep.subr.mxu0 0.0
    %948 = vmatpush1.msra.mxu0 %v181
    %949 = vmatprep.subr.mxu0 0.0
    %950 = vmatpush1.msra.mxu0 %v180
    %951 = vmatprep.subr.mxu0 0.0
    %952 = vmatpush1.msra.mxu0 %v179
    %953 = vmatprep.subr.mxu0 0.0
    %954 = vmatpush1.msra.mxu0 %v178
    %955 = vmatprep.subr.mxu0 0.0
    %956 = vmatpush1.msra.mxu0 %v177
    %957 = vmatprep.subr.mxu0 0.0
    %958 = vmatpush1.msra.mxu0 %v176
    %959 = vmatprep.subr.mxu0 0.0
    %960 = vmatpush1.msra.mxu0 %v175
    %961 = vmatprep.subr.mxu0 0.0
    %962 = vmatpush1.msra.mxu0 %v174
    %963 = vmatprep.subr.mxu0 0.0
    %964 = vmatpush1.msra.mxu0 %v173
    %965 = vmatprep.subr.mxu0 0.0
    %966 = vmatpush1.msra.mxu0 %v172
    %967 = vmatprep.subr.mxu0 0.0
    %968 = vmatpush2.msra.mxu0 0.0
    %969 = vmatprep.subr.mxu0 0.0
    %970 = vmatpush2.msra.mxu0 0.0
    %971 = vmatprep.subr.mxu0 0.0
    %972 = vmatpush2.msra.mxu0 0.0
    %973 = vmatprep.subr.mxu0 0.0
    %974 = vmatpush2.msra.mxu0 0.0
    %975 = vmatprep.subr.mxu0 0.0
    %976 = vmatpush2.msra.mxu0 0.0
    %977 = vmatprep.subr.mxu0 0.0
    %978 = vmatpush2.msra.mxu0 0.0
    %979 = vmatprep.subr.mxu0 0.0
    %980 = vmatpush2.msra.mxu0 0.0
    %981 = vmatprep.subr.mxu0 0.0
    %982 = vmatpush2.msra.mxu0 0.0
    %983 = vmatprep.subr.mxu0 0.0
    %984 = vmatpush2.msra.mxu0 0.0
    %985 = vmatprep.subr.mxu0 0.0
    %986 = vmatpush2.msra.mxu0 0.0
    %987 = vmatprep.subr.mxu0 0.0
    %988 = vmatpush2.msra.mxu0 0.0
    %989 = vmatprep.subr.mxu0 0.0
    %990 = vmatpush2.msra.mxu0 0.0
    %991 = vmatprep.subr.mxu0 0.0
    %992 = vmatpush2.msra.mxu0 0.0
    %993 = vmatprep.subr.mxu0 0.0
    %994 = vmatpush2.msra.mxu0 0.0
    %995 = vmatprep.subr.mxu0 0.0
    %996 = vmatpush2.msra.mxu0 0.0
    %997 = vmatprep.subr.mxu0 0.0
    %998 = vmatpush2.msra.mxu0 0.0
    %999 = vmatprep.mubr.f32.mxu0 0.0
    %1000 = vmatmul.mubr.f32.gmra.mxu0 %v784
    %v1001 = vpop.f32.mrf.mxu0
    %v1002 = vadd.f32 0.0, %v1001
    %v1003 = vpop.f32.mrf.mxu0
    %1004 = vdwg.mxu0
    %v1005 = vadd.f32 %v934, %v1002
    %1006 = vst.msk [vmem:[%s933] sm:$0xff] %vm857, %v1005
    // Predicated region
    $region14: #{hsi_calculator.1} parent=1 // pred_check
      _
    $region15: #{hsi_calculator.1} parent=1 // pred_check_branch
      %1008 = sbr.rel (0) target = $region17
    $region16: #{hsi_calculator.1} parent=1 // pred_region
      _
    $region17: #{hsi_calculator.1} parent=1 // pred_fallthru
      _
    // Predicated region
    $region18: #{hsi_calculator.1} parent=1 // pred_check
      _
    $region19: #{hsi_calculator.1} parent=1 // pred_check_branch
      %1010 = sbr.rel (0) target = $region21
    $region20: #{hsi_calculator.1} parent=1 // pred_region
      _
    $region21: #{hsi_calculator.1} parent=1 // pred_fallthru
      _
    %1011 = vsyncpa [#allocation3], 1

</llo_original>
